<compile_context>
chip_gen: v6e
topology: v6e:2x2x1
jax: 0.10.0
libtpu: 0.0.40
codegen_flags: <defaults>
</compile_context>

<pallas_src>
import jax
import jax.numpy as jnp
from jax.experimental import pallas as pl
from jax.experimental.pallas import tpu as pltpu

LANES = 128
SUBLANES = 8
TR_MAX = 1024                      # max rows per tile (512 KiB f32 block)
VMEM_BUDGET = 12 * 1024 * 1024     # conservative: fits every gen's default scoped VMEM


def _make_weighted_kernel(n):
    def kernel(w_ref, *refs):
        # w_ref : (n-1,) float32 coefficients in SMEM
        # refs  : n input tiles (tr, 128) + 1 output tile (tr, 128)
        x_refs = refs[:n]
        o_ref = refs[n]
        acc = x_refs[0][...].astype(jnp.float32)
        for i in range(n - 1):
            acc = acc + x_refs[i + 1][...].astype(jnp.float32) * w_ref[i]
        o_ref[...] = acc.astype(o_ref.dtype)
    return kernel


def _make_plain_kernel(n):
    def kernel(*refs):
        x_refs = refs[:n]
        o_ref = refs[n]
        acc = x_refs[0][...].astype(jnp.float32)
        for i in range(n - 1):
            acc = acc + x_refs[i + 1][...].astype(jnp.float32)
        o_ref[...] = acc.astype(o_ref.dtype)
    return kernel


def pallas_sum(xs, w=None, weight=False):
    """xs: list of n arrays with identical shape/dtype (NCHW).
       w : parameter of shape (n-1,) when weight=True (same init as PyTorch)."""
    n = len(xs)
    orig_shape = xs[0].shape
    dtype = xs[0].dtype
    total = xs[0].size

    if n == 1:
        return xs[0]

    itemsize = jnp.dtype(dtype).itemsize
    sublane = SUBLANES * max(1, 4 // itemsize)   # 8 f32, 16 bf16, 32 int8

    # ---- choose the row-tile size ----------------------------------------
    rows_needed = -(-total // LANES)             # cdiv(total, 128)
    # cap so double-buffered (n inputs + 1 output) blocks fit the VMEM budget
    tr_cap = VMEM_BUDGET // (2 * (n + 1) * LANES * itemsize)
    tr = min(TR_MAX, max(sublane, tr_cap))
    tr = (tr // sublane) * sublane
    if rows_needed <= tr:
        # tiny input: shrink the tile to just cover it (single grid step)
        tr = max(sublane, ((rows_needed + sublane - 1) // sublane) * sublane)

    # ---- pad flattened length to a multiple of tr*128 so no rows are dropped
    pad = (-total) % (tr * LANES)
    padded = total + pad
    rows = padded // LANES
    grid = (rows // tr,)

    def to_slab(x):
        f = x.reshape(-1)
        if pad:
            # TODO(synk): avoid this full-array copy for ragged sizes by
            # handling the tail block with a masked store instead of padding.
            f = jnp.pad(f, (0, pad))
        return f.reshape(rows, LANES)

    slabs = [to_slab(x) for x in xs]

    tile_spec = lambda: pl.BlockSpec((tr, LANES), lambda r: (r, 0))

    if weight:
        coeffs = (jax.nn.sigmoid(w) * 2.0).astype(jnp.float32)
        kernel = _make_weighted_kernel(n)
        in_specs = [pl.BlockSpec(memory_space=pltpu.MemorySpace.SMEM)] + \
                   [tile_spec() for _ in range(n)]
        operands = (coeffs, *slabs)
    else:
        kernel = _make_plain_kernel(n)
        in_specs = [tile_spec() for _ in range(n)]
        operands = tuple(slabs)

    out = pl.pallas_call(
        kernel,
        out_shape=jax.ShapeDtypeStruct((rows, LANES), dtype),
        grid_spec=pl.GridSpec(
            grid=grid,
            in_specs=in_specs,
            out_specs=tile_spec(),
        ),
        compiler_params=pltpu.CompilerParams(
            dimension_semantics=("parallel",)),
    )(*operands)

    flat = out.reshape(-1)
    if pad:
        flat = flat[:total]
    return flat.reshape(orig_shape)


if __name__ == "__main__":
    key = jax.random.PRNGKey(0)
    n = 3
    B, C, H, W = 2, 4, 16, 16
    keys = jax.random.split(key, n)
    xs = [jax.random.normal(k, (B, C, H, W), jnp.float32) for k in keys]

    # Deterministic parameter init, exactly as nn.Parameter(-arange(1., n)/2)
    w_param = -(jnp.arange(1.0, n, dtype=jnp.float32)) / 2.0

    # weighted variant
    y = jax.block_until_ready(pallas_sum(xs, w_param, weight=True))
    coeffs = jax.nn.sigmoid(w_param) * 2.0
    ref = xs[0] + xs[1] * coeffs[0] + xs[2] * coeffs[1]
    assert y.shape == (B, C, H, W) and y.dtype == jnp.float32
    assert jnp.allclose(y, ref, atol=1e-5, rtol=1e-5)

    # unweighted variant
    y2 = jax.block_until_ready(pallas_sum(xs, weight=False))
    ref2 = xs[0] + xs[1] + xs[2]
    assert jnp.allclose(y2, ref2, atol=1e-5, rtol=1e-5)

    # larger, non-aligned size to exercise the padded / multi-step-grid path
    xs_big = [jax.random.normal(k, (2, 8, 37, 53), jnp.float32)
              for k in jax.random.split(jax.random.PRNGKey(1), n)]
    y3 = jax.block_until_ready(pallas_sum(xs_big, w_param, weight=True))
    ref3 = xs_big[0] + xs_big[1] * coeffs[0] + xs_big[2] * coeffs[1]
    assert jnp.allclose(y3, ref3, atol=1e-5, rtol=1e-5)

    print("KERNEL_OK")
</pallas_src>

<mosaic_0001>
module attributes {stable_mosaic.version = 11 : i64} {
  func.func @kernel(%arg0: i32, %arg1: memref<2xf32, #tpu.memory_space<smem>>, %arg2: memref<16x128xf32, #tpu.memory_space<vmem>>, %arg3: memref<16x128xf32, #tpu.memory_space<vmem>>, %arg4: memref<16x128xf32, #tpu.memory_space<vmem>>, %arg5: memref<16x128xf32, #tpu.memory_space<vmem>>) attributes {dimension_semantics = [#tpu.dimension_semantics<parallel>], iteration_bounds = array<i64: 1>, scalar_prefetch = 0 : i64, scratch_operands = 0 : i64, tpu.core_type = #tpu.core_type<tc>, window_params = [{transform_indices = @transform_0, window_bounds = array<i64: 2>}, {transform_indices = @transform_1, window_bounds = array<i64: 16, 128>}, {transform_indices = @transform_2, window_bounds = array<i64: 16, 128>}, {transform_indices = @transform_3, window_bounds = array<i64: 16, 128>}, {transform_indices = @transform_4, window_bounds = array<i64: 16, 128>}]} {
    %c0 = arith.constant 0 : index
    %c0_0 = arith.constant 0 : index
    %0 = vector.load %arg2[%c0, %c0_0] : memref<16x128xf32, #tpu.memory_space<vmem>>, vector<16x128xf32>
    %c0_1 = arith.constant 0 : index
    %c0_2 = arith.constant 0 : index
    %1 = vector.load %arg3[%c0_1, %c0_2] : memref<16x128xf32, #tpu.memory_space<vmem>>, vector<16x128xf32>
    %c0_3 = arith.constant 0 : index
    %2 = memref.load %arg1[%c0_3] : memref<2xf32, #tpu.memory_space<smem>>
    %3 = vector.broadcast %2 : f32 to vector<16x128xf32>
    %4 = arith.mulf %1, %3 : vector<16x128xf32>
    %5 = arith.addf %0, %4 : vector<16x128xf32>
    %c0_4 = arith.constant 0 : index
    %c0_5 = arith.constant 0 : index
    %6 = vector.load %arg4[%c0_4, %c0_5] : memref<16x128xf32, #tpu.memory_space<vmem>>, vector<16x128xf32>
    %c1 = arith.constant 1 : index
    %7 = memref.load %arg1[%c1] : memref<2xf32, #tpu.memory_space<smem>>
    %8 = vector.broadcast %7 : f32 to vector<16x128xf32>
    %9 = arith.mulf %6, %8 : vector<16x128xf32>
    %10 = arith.addf %5, %9 : vector<16x128xf32>
    %c0_6 = arith.constant 0 : index
    %c0_7 = arith.constant 0 : index
    %11 = vector.load %arg5[%c0_6, %c0_7] : memref<16x128xf32, #tpu.memory_space<vmem>>, vector<16x128xf32>
    tpu.vector_store %arg5[%c0_6, %c0_7], %10 {strides = array<i32>} : memref<16x128xf32, #tpu.memory_space<vmem>>, vector<16x128xf32>,
    return
  }
  func.func @transform_0(%arg0: i32) -> i32 {
    %c0_i32 = arith.constant 0 : i32
    %c0_i32_0 = arith.constant 0 : i32
    return %c0_i32 : i32
  }
  func.func @transform_1(%arg0: i32) -> (i32, i32) {
    %c0_i32 = arith.constant 0 : i32
    %c0_i32_0 = arith.constant 0 : i32
    return %arg0, %c0_i32 : i32, i32
  }
  func.func @transform_2(%arg0: i32) -> (i32, i32) {
    %c0_i32 = arith.constant 0 : i32
    %c0_i32_0 = arith.constant 0 : i32
    return %arg0, %c0_i32 : i32, i32
  }
  func.func @transform_3(%arg0: i32) -> (i32, i32) {
    %c0_i32 = arith.constant 0 : i32
    %c0_i32_0 = arith.constant 0 : i32
    return %arg0, %c0_i32 : i32, i32
  }
  func.func @transform_4(%arg0: i32) -> (i32, i32) {
    %c0_i32 = arith.constant 0 : i32
    %c0_i32_0 = arith.constant 0 : i32
    return %arg0, %c0_i32 : i32, i32
  }
}

</mosaic_0001>

<llo_original>
// kernel: tpu_custom_call.1
$region0: #{tpu_custom_call.1}
  #allocation0 [shape = 'u32[]', space=smem, size = 0x4, offset = 0x4, fixed_abs, tag = 'smem constant byte address 0x4 - core index']
  #allocation1 [shape = 'u32[144,128]{1,0:T(1,128)}', space=vmem, size = 0x12000, scoped, tag = 'internal scratch']
  %s0 = inlined_call_operand.hbm [shape: f32[2], index: 0, kind: input, shape index: {}]
  %s1 = inlined_call_operand.hbm [shape: f32[16,128], index: 1, kind: input, shape index: {}]
  %s2 = inlined_call_operand.hbm [shape: f32[16,128], index: 2, kind: input, shape index: {}]
  %s3 = inlined_call_operand.hbm [shape: f32[16,128], index: 3, kind: input, shape index: {}]
  %s4 = inlined_call_operand.hbm [shape: f32[16,128], index: 4, kind: output, shape index: {}]
  %s5 = sld [smem:[#allocation0]]
  $region42: #{tpu_custom_call.1} parent=0
    _
  %s7 = ssub.s32 1, %s5
  %s8 = scalar_select 0, %s7, %s5
  $region1: #{tpu_custom_call.1} parent=0
    #allocation2 [shape = 'u8[512]{0}', space=smem, size = 0x200, scoped, tag = 'input window, operand 0, single buffered']
    #allocation3 [shape = 's32[1]{0}', space=sflag, size = 0x4, scoped, tag = 'scoped memory for tpu_custom_call.1']
    #allocation4 [shape = 's32[1]{0}', space=sflag, size = 0x4, scoped, tag = 'scoped memory for tpu_custom_call.1']
    #allocation5 [shape = 's32[1]{0}', space=sflag, size = 0x4, scoped, tag = 'scoped memory for tpu_custom_call.1']
    #allocation6 [shape = 'u8[8192]{0}', space=vmem, size = 0x2000, scoped, tag = 'input window, operand 1, single buffered']
    #allocation7 [shape = 'u8[8192]{0}', space=vmem, size = 0x2000, scoped, tag = 'input window, operand 2, single buffered']
    #allocation8 [shape = 's32[1]{0}', space=sflag, size = 0x4, scoped, tag = 'scoped memory for tpu_custom_call.1']
    #allocation9 [shape = 'u8[8192]{0}', space=vmem, size = 0x2000, scoped, tag = 'input window, operand 3, single buffered']
    #allocation10 [shape = 'u8[8192]{0}', space=vmem, size = 0x2000, scoped, tag = 'output window, operand 0, single buffered']
    %9 = vsyncpa [#allocation5], 0
    %10 = vsyncpa [#allocation3], 0
    %11 = vsyncpa [#allocation8], 0
    %12 = vsyncpa [#allocation4], 0
    // Predicated region
    $region2: #{tpu_custom_call.1} parent=1 // pred_check
      _
    $region3: #{tpu_custom_call.1} parent=1 // pred_check_branch
      %14 = sbr.rel (0) target = $region5
    $region4: #{tpu_custom_call.1} parent=1 // pred_region
      %s16 = ssub.s32 16, 16
      %17 = vsyncadd [#allocation5], %s16
      %20 = dma.hbm_to_smem %s0, 16, [#allocation2], [#allocation5]
    $region5: #{tpu_custom_call.1} parent=1 // pred_fallthru
      _
    // Predicated region
    $region6: #{tpu_custom_call.1} parent=1 // pred_check
      _
    $region7: #{tpu_custom_call.1} parent=1 // pred_check_branch
      %22 = sbr.rel (0) target = $region9
    $region8: #{tpu_custom_call.1} parent=1 // pred_region
      %s24 = ssub.s32 256, 256
      %25 = vsyncadd [#allocation3], %s24
      %s26 = sshll.u32 [#allocation6], 4
      %s27 = int_to_ptr.vmem [resolvable:$true] %s26
      %32 = dma.hbm_to_vmem [thread:$0]  %s1, 256, %s27, [#allocation3], 128, 128, 8
    $region9: #{tpu_custom_call.1} parent=1 // pred_fallthru
      _
    // Predicated region
    $region10: #{tpu_custom_call.1} parent=1 // pred_check
      _
    $region11: #{tpu_custom_call.1} parent=1 // pred_check_branch
      %34 = sbr.rel (0) target = $region13
    $region12: #{tpu_custom_call.1} parent=1 // pred_region
      %s36 = ssub.s32 256, 256
      %37 = vsyncadd [#allocation8], %s36
      %s38 = sshll.u32 [#allocation7], 4
      %s39 = int_to_ptr.vmem [resolvable:$true] %s38
      %44 = dma.hbm_to_vmem [thread:$0]  %s2, 256, %s39, [#allocation8], 128, 128, 8
    $region13: #{tpu_custom_call.1} parent=1 // pred_fallthru
      _
    // Predicated region
    $region14: #{tpu_custom_call.1} parent=1 // pred_check
      _
    $region15: #{tpu_custom_call.1} parent=1 // pred_check_branch
      %46 = sbr.rel (0) target = $region17
    $region16: #{tpu_custom_call.1} parent=1 // pred_region
      %s48 = ssub.s32 256, 256
      %49 = vsyncadd [#allocation8], %s48
      %s50 = sshll.u32 [#allocation9], 4
      %s51 = int_to_ptr.vmem [resolvable:$true] %s50
      %56 = dma.hbm_to_vmem [thread:$0]  %s3, 256, %s51, [#allocation8], 128, 128, 8
    $region17: #{tpu_custom_call.1} parent=1 // pred_fallthru
      _
    // Predicated region
    $region18: #{tpu_custom_call.1} parent=1 // pred_check
      _
    $region19: #{tpu_custom_call.1} parent=1 // pred_check_branch
      %58 = sbr.rel (0) target = $region21
    $region20: #{tpu_custom_call.1} parent=1 // pred_region
      %59 = dma.done [#allocation5], 16
    $region21: #{tpu_custom_call.1} parent=1 // pred_fallthru
      _
    // Predicated region
    $region22: #{tpu_custom_call.1} parent=1 // pred_check
      _
    $region23: #{tpu_custom_call.1} parent=1 // pred_check_branch
      %61 = sbr.rel (0) target = $region25
    $region24: #{tpu_custom_call.1} parent=1 // pred_region
      %62 = dma.done [#allocation3], 256
    $region25: #{tpu_custom_call.1} parent=1 // pred_fallthru
      _
    // Predicated region
    $region26: #{tpu_custom_call.1} parent=1 // pred_check
      _
    $region27: #{tpu_custom_call.1} parent=1 // pred_check_branch
      %64 = sbr.rel (0) target = $region29
    $region28: #{tpu_custom_call.1} parent=1 // pred_region
      %65 = dma.done [#allocation8], 256
    $region29: #{tpu_custom_call.1} parent=1 // pred_fallthru
      _
    // Predicated region
    $region30: #{tpu_custom_call.1} parent=1 // pred_check
      _
    $region31: #{tpu_custom_call.1} parent=1 // pred_check_branch
      %67 = sbr.rel (0) target = $region33
    $region32: #{tpu_custom_call.1} parent=1 // pred_region
      %68 = dma.done [#allocation8], 256
    $region33: #{tpu_custom_call.1} parent=1 // pred_fallthru
      _
    %69 = sfence
    %v70 = vld [vmem:[#allocation6] sm:$0xff]
    %v71 = vld [vmem:[#allocation6 + $0x8] sm:$0xff]
    %v72 = vld [vmem:[#allocation7] sm:$0xff]
    %v73 = vld [vmem:[#allocation7 + $0x8] sm:$0xff]
    %s74 = sld [smem:[#allocation2]]
    %v75 = vstv %s74
    %v76 = vmul.f32 %v72, %v75
    %v77 = vmul.f32 %v73, %v75
    %v78 = vadd.f32 %v70, %v76
    %v79 = vadd.f32 %v71, %v77
    %v80 = vld [vmem:[#allocation9] sm:$0xff]
    %v81 = vld [vmem:[#allocation9 + $0x8] sm:$0xff]
    %s82 = sld [smem:[#allocation2 + $0x1]]
    %v83 = vstv %s82
    %v84 = vmul.f32 %v80, %v83
    %v85 = vmul.f32 %v81, %v83
    %v86 = vadd.f32 %v78, %v84
    %v87 = vadd.f32 %v79, %v85
    %88 = vst [vmem:[#allocation10] sm:$0xff] %v86
    %89 = vst [vmem:[#allocation10 + $0x8] sm:$0xff] %v87
    // Predicated region
    $region34: #{tpu_custom_call.1} parent=1 // pred_check
      _
    $region35: #{tpu_custom_call.1} parent=1 // pred_check_branch
      %91 = sbr.rel (0) target = $region37
    $region36: #{tpu_custom_call.1} parent=1 // pred_region
      %s93 = ssub.s32 256, 256
      %94 = vsyncadd [#allocation4], %s93
      %s95 = sshll.u32 [#allocation10], 4
      %s96 = int_to_ptr.vmem [resolvable:$true] %s95
      %101 = dma.vmem_to_hbm [thread:$0]  %s96, 256, %s4, [#allocation4], 128, 128, 8
    $region37: #{tpu_custom_call.1} parent=1 // pred_fallthru
      _
    // Predicated region
    $region38: #{tpu_custom_call.1} parent=1 // pred_check
      _
    $region39: #{tpu_custom_call.1} parent=1 // pred_check_branch
      %103 = sbr.rel (0) target = $region41
    $region40: #{tpu_custom_call.1} parent=1 // pred_region
      %104 = dma.done [#allocation4], 256
    $region41: #{tpu_custom_call.1} parent=1 // pred_fallthru
      _
    %105 = vsyncpa [#allocation3], 1
    %106 = vsyncpa [#allocation8], 1
    %107 = vsyncpa [#allocation4], 1
    %108 = vsyncpa [#allocation5], 1

</llo_original>
